<compile_context>
chip_gen: v7x
topology: tpu7x:2x2x1
jax: 0.10.0
libtpu: 0.0.40
codegen_flags: <defaults>
</compile_context>

<pallas_src>
import jax
import jax.numpy as jnp
from jax.experimental import pallas as pl
from jax.experimental.pallas import tpu as pltpu


K_TILE_MAX = 2048  # fc1 reduction tile (multiple of 128) when D_in is large.


def _round_up(x, m):
    return (x + m - 1) // m * m


# --------------------------------------------------------------------------
# Kernel
# --------------------------------------------------------------------------
def fast_rcnn_predictor_kernel(
    x_ref,     # [TILE_N, TK]       f32  flattened RoI feature K-slab
    w1_ref,    # [TK, M]            bf16 fc1 weight K-slab (streamed)
    b1_ref,    # [1, M]             f32  fc1 bias          (resident)
    w2_ref,    # [M, M]             bf16 fc2 weight        (resident)
    b2_ref,    # [1, M]             f32  fc2 bias          (resident)
    wh_ref,    # [M, HEAD_PAD]      bf16 fused cls||bbox weight (resident)
    bh_ref,    # [1, HEAD_PAD]      f32  fused bias             (resident)
    out_ref,   # [TILE_N, HEAD_PAD] f32  fused (score || bbox) output
    h1_acc,    # [TILE_N, M]        f32  VMEM scratch: fc1 accumulator
):
    k = pl.program_id(1)

    @pl.when(k == 0)
    def _():
        h1_acc[...] = jnp.zeros_like(h1_acc)

    # fc1 partial product: cast x to bf16 in-kernel, accumulate in f32.
    h1_acc[...] += jnp.dot(
        x_ref[...].astype(jnp.bfloat16), w1_ref[...],
        preferred_element_type=jnp.float32)

    @pl.when(k == pl.num_programs(1) - 1)
    def _():
        # fc1 bias + ReLU (f32 VPU work; slack under the matmuls).
        h1 = jnp.maximum(h1_acc[...] + b1_ref[...], 0.0)

        # fc2 + ReLU
        h2 = jnp.dot(h1.astype(jnp.bfloat16), w2_ref[...],
                     preferred_element_type=jnp.float32)
        h2 = jnp.maximum(h2 + b2_ref[...], 0.0)

        # Fused heads: one lane-dense matmul + store; split in the wrapper.
        out = jnp.dot(h2.astype(jnp.bfloat16), wh_ref[...],
                      preferred_element_type=jnp.float32)
        out_ref[...] = (out + bh_ref[...]).astype(out_ref.dtype)


# --------------------------------------------------------------------------
# One-time parameter preparation (hoisted out of the per-call forward path)
# --------------------------------------------------------------------------
def prepare_params(params, *, k_tile=K_TILE_MAX):
    """Fuse/pad/cast the Linear parameters once.

    params: (w1, b1, w2, b2, wc, bc, wb, bb) with weights stored as
    (in_features, out_features).  Returns a dict of device arrays (bf16
    weights, f32 biases) plus static layout metadata.
    """
    w1, b1, w2, b2, wc, bc, wb, bb = params
    d_in, m = w1.shape
    num_classes = wc.shape[1]

    # Fused heads, padded to a lane-dense multiple of 128.
    head_dim = 5 * num_classes
    head_pad = _round_up(head_dim, 128)
    w_head = jnp.concatenate([wc, wb], axis=1)
    b_head = jnp.concatenate([bc, bb], axis=1)
    if head_pad != head_dim:
        w_head = jnp.pad(w_head, ((0, 0), (0, head_pad - head_dim)))
        b_head = jnp.pad(b_head, ((0, 0), (0, head_pad - head_dim)))

    # fc1 reduction (K) tiling: stream W1 when D_in is large.
    if d_in <= k_tile:
        tk, d_pad = d_in, d_in
    else:
        tk = k_tile
        d_pad = _round_up(d_in, tk)
        w1 = jnp.pad(w1, ((0, d_pad - d_in), (0, 0)))

    return dict(
        w1=w1.astype(jnp.bfloat16),
        b1=b1.astype(jnp.float32),
        w2=w2.astype(jnp.bfloat16),
        b2=b2.astype(jnp.float32),
        wh=w_head.astype(jnp.bfloat16),
        bh=b_head.astype(jnp.float32),
        num_classes=num_classes, head_dim=head_dim, head_pad=head_pad,
        d_in=d_in, d_pad=d_pad, tk=tk, m=m,
    )


# --------------------------------------------------------------------------
# Forward wrapper
# --------------------------------------------------------------------------
def _vmem_limit_bytes():
    try:
        cap = pltpu.get_tpu_info().vmem_capacity_bytes
    except Exception:
        cap = 64 * 1024 * 1024            # conservative (v7x per-TC VMEM)
    return min(100 * 1024 * 1024, int(0.85 * cap))


def _pick_tile_n(n, tile_n):
    if tile_n is None:
        tile_n = 256 if n >= 512 else 128
    tile_n = max(8, _round_up(tile_n, 8))
    n8 = _round_up(n, 8)
    tile_n = min(tile_n, n8)
    # Keep >= 2 grid steps on the "parallel" axis for mid-size batches so both
    # v7x TensorCores get work.
    if n >= 16 and n8 < 2 * tile_n:
        tile_n = _round_up(n, 16) // 2    # multiple of 8 by construction
    return tile_n


def _build_call(*, tile_n, tk, m, head_pad, n_pad, d_pad, flops,
                bytes_accessed, buffer_weights):
    resident = {}
    if buffer_weights:
        resident = dict(pipeline_mode=pl.Buffered(1))   # single-buffer constants

    return pl.pallas_call(
        fast_rcnn_predictor_kernel,
        out_shape=jax.ShapeDtypeStruct((n_pad, head_pad), jnp.float32),
        grid=(n_pad // tile_n, d_pad // tk),
        in_specs=[
            pl.BlockSpec((tile_n, tk), lambda i, k: (i, k)),            # x slab
            pl.BlockSpec((tk, m), lambda i, k: (k, 0)),                 # w1 slab
            pl.BlockSpec((1, m), lambda i, k: (0, 0), **resident),      # b1
            pl.BlockSpec((m, m), lambda i, k: (0, 0), **resident),      # w2
            pl.BlockSpec((1, m), lambda i, k: (0, 0), **resident),      # b2
            pl.BlockSpec((m, head_pad), lambda i, k: (0, 0), **resident),  # head W
            pl.BlockSpec((1, head_pad), lambda i, k: (0, 0), **resident),  # head b
        ],
        out_specs=pl.BlockSpec((tile_n, head_pad), lambda i, k: (i, 0)),
        scratch_shapes=[pltpu.VMEM((tile_n, m), jnp.float32)],
        compiler_params=pltpu.CompilerParams(
            dimension_semantics=("parallel", "arbitrary"),
            vmem_limit_bytes=_vmem_limit_bytes(),
        ),
        cost_estimate=pl.CostEstimate(
            flops=flops, transcendentals=0, bytes_accessed=bytes_accessed),
    )


def fast_rcnn_predictor(x_nchw, prepared, *, tile_n=None):
    """x_nchw: [N, C, H, W] float32.  prepared: output of prepare_params().
    Returns (score [N, num_classes], bbox_delta [N, 4*num_classes]) in f32."""
    n = x_nchw.shape[0]
    x2d = x_nchw.reshape(n, -1).astype(jnp.float32)   # flatten(start_dim=1)

    d_in, d_pad, tk = prepared["d_in"], prepared["d_pad"], prepared["tk"]
    m, head_pad = prepared["m"], prepared["head_pad"]
    head_dim, num_classes = prepared["head_dim"], prepared["num_classes"]
    assert x2d.shape[1] == d_in, "feature size mismatch with fc1"

    tile_n = _pick_tile_n(n, tile_n)
    n_pad = _round_up(n, tile_n)
    if n_pad != n or d_pad != d_in:
        x2d = jnp.pad(x2d, ((0, n_pad - n), (0, d_pad - d_in)))

    flops = 2 * n_pad * (d_pad * m + m * m + m * head_pad)
    bytes_accessed = int(
        x2d.size * 4
        + prepared["w1"].size * 2 + prepared["w2"].size * 2
        + prepared["wh"].size * 2
        + prepared["b1"].size * 4 + prepared["b2"].size * 4
        + prepared["bh"].size * 4
        + n_pad * head_pad * 4)

    call_args = (x2d, prepared["w1"], prepared["b1"], prepared["w2"],
                 prepared["b2"], prepared["wh"], prepared["bh"])
    common = dict(tile_n=tile_n, tk=tk, m=m, head_pad=head_pad, n_pad=n_pad,
                  d_pad=d_pad, flops=flops, bytes_accessed=bytes_accessed)
    try:
        fused_out = _build_call(buffer_weights=True, **common)(*call_args)
    except Exception:
        # Fallback for JAX builds where BlockSpec pipeline_mode=Buffered(1)
        # is unsupported; default double-buffering is correct, just uses more
        # VMEM for the resident constants.
        fused_out = _build_call(buffer_weights=False, **common)(*call_args)

    # Strip N padding and split the fused output back into the two heads.
    score = fused_out[:n, :num_classes]
    bbox_delta = fused_out[:n, num_classes:head_dim]
    return score, bbox_delta


# --------------------------------------------------------------------------
# Synthetic parameters + pure-JAX reference
# --------------------------------------------------------------------------
def init_params(key, in_channels, mid_channels, num_classes):
    """Deterministic synthetic parameters.  Weights are stored as
    (in_features, out_features) — transposed vs torch.nn.Linear's (out, in) —
    so the kernel computes x @ W."""
    ks = jax.random.split(key, 8)
    scale = 0.02

    def w(k, shape):
        return (scale * jax.random.normal(k, shape)).astype(jnp.float32)

    w1 = w(ks[0], (in_channels, mid_channels))
    b1 = w(ks[1], (1, mid_channels))
    w2 = w(ks[2], (mid_channels, mid_channels))
    b2 = w(ks[3], (1, mid_channels))
    wc = w(ks[4], (mid_channels, num_classes))
    bc = w(ks[5], (1, num_classes))
    wb = w(ks[6], (mid_channels, num_classes * 4))
    bb = w(ks[7], (1, num_classes * 4))
    return (w1, b1, w2, b2, wc, bc, wb, bb)


def reference_forward(x_nchw, params):
    """Pure-JAX f32 reference of the PyTorch forward, for validation."""
    w1, b1, w2, b2, wc, bc, wb, bb = params
    x = x_nchw.reshape(x_nchw.shape[0], -1)
    x = jax.nn.relu(x @ w1 + b1)
    x = jax.nn.relu(x @ w2 + b2)
    return x @ wc + bc, x @ wb + bb


if __name__ == "__main__":
    # Small shapes consistent with the module: RoI features [N, C, H, W].
    N, C, H, W = 8, 4, 4, 4          # in_channels = C*H*W = 64
    in_channels = C * H * W
    mid_channels = 32
    num_classes = 5

    key = jax.random.PRNGKey(0)
    k_x, k_p = jax.random.split(key)
    x = jax.random.normal(k_x, (N, C, H, W), dtype=jnp.float32)
    params = init_params(k_p, in_channels, mid_channels, num_classes)
    prepared = prepare_params(params)     # one-time: concat/pad/bf16 casts

    score, bbox_delta = fast_rcnn_predictor(x, prepared)
    score = jax.block_until_ready(score)
    bbox_delta = jax.block_until_ready(bbox_delta)

    # Sanity check against the pure-JAX f32 reference.  Tolerances are relaxed
    # because the kernel feeds the MXU bf16 operands (f32 accumulation).
    ref_score, ref_bbox = reference_forward(x, params)
    assert score.shape == (N, num_classes)
    assert bbox_delta.shape == (N, num_classes * 4)
    assert jnp.allclose(score, ref_score, atol=1e-2, rtol=1e-2)
    assert jnp.allclose(bbox_delta, ref_bbox, atol=1e-2, rtol=1e-2)

    print("KERNEL_OK")
</pallas_src>

<mosaic_0001>
module attributes {stable_mosaic.version = 11 : i64} {
  func.func @fast_rcnn_predictor_kernel(%arg0: i32, %arg1: i32, %arg2: memref<8x64xf32, #tpu.memory_space<vmem>>, %arg3: memref<64x32xbf16, #tpu.memory_space<vmem>>, %arg4: memref<1x32xf32, #tpu.memory_space<vmem>>, %arg5: memref<32x32xbf16, #tpu.memory_space<vmem>>, %arg6: memref<1x32xf32, #tpu.memory_space<vmem>>, %arg7: memref<32x128xbf16, #tpu.memory_space<vmem>>, %arg8: memref<1x128xf32, #tpu.memory_space<vmem>>, %arg9: memref<8x128xf32, #tpu.memory_space<vmem>>, %arg10: memref<8x32xf32, #tpu.memory_space<vmem>>) attributes {dimension_semantics = [#tpu.dimension_semantics<parallel>, #tpu.dimension_semantics<arbitrary>], iteration_bounds = array<i64: 1, 1>, scalar_prefetch = 0 : i64, scratch_operands = 1 : i64, tpu.core_type = #tpu.core_type<tc>, window_params = [{transform_indices = @transform_0, window_bounds = array<i64: 8, 64>}, {transform_indices = @transform_1, window_bounds = array<i64: 64, 32>}, {pipeline_mode = #tpu.pipeline_mode<synchronous>, transform_indices = @transform_2, window_bounds = array<i64: 1, 32>}, {pipeline_mode = #tpu.pipeline_mode<synchronous>, transform_indices = @transform_3, window_bounds = array<i64: 32, 32>}, {pipeline_mode = #tpu.pipeline_mode<synchronous>, transform_indices = @transform_4, window_bounds = array<i64: 1, 32>}, {pipeline_mode = #tpu.pipeline_mode<synchronous>, transform_indices = @transform_5, window_bounds = array<i64: 32, 128>}, {pipeline_mode = #tpu.pipeline_mode<synchronous>, transform_indices = @transform_6, window_bounds = array<i64: 1, 128>}, {transform_indices = @transform_7, window_bounds = array<i64: 8, 128>}]} {
    %c0_i32 = arith.constant 0 : i32
    %0 = arith.cmpi eq, %arg1, %c0_i32 : i32
    %1 = arith.extui %0 : i1 to i32
    %c0_i32_0 = arith.constant 0 : i32
    %2 = arith.cmpi ne, %1, %c0_i32_0 : i32
    scf.if %2 {
      %cst_10 = arith.constant 0.000000e+00 : f32
      %13 = vector.broadcast %cst_10 : f32 to vector<8x32xf32>
      %c0_11 = arith.constant 0 : index
      %c0_12 = arith.constant 0 : index
      %14 = vector.load %arg10[%c0_11, %c0_12] : memref<8x32xf32, #tpu.memory_space<vmem>>, vector<8x32xf32>
      tpu.vector_store %arg10[%c0_11, %c0_12], %13 {strides = array<i32>} : memref<8x32xf32, #tpu.memory_space<vmem>>, vector<8x32xf32>,
    } else {
    }
    %c0 = arith.constant 0 : index
    %c0_1 = arith.constant 0 : index
    %3 = vector.load %arg10[%c0, %c0_1] : memref<8x32xf32, #tpu.memory_space<vmem>>, vector<8x32xf32>
    %c0_2 = arith.constant 0 : index
    %c0_3 = arith.constant 0 : index
    %4 = vector.load %arg2[%c0_2, %c0_3] : memref<8x64xf32, #tpu.memory_space<vmem>>, vector<8x64xf32>
    %5 = arith.truncf %4 : vector<8x64xf32> to vector<8x64xbf16>
    %c0_4 = arith.constant 0 : index
    %c0_5 = arith.constant 0 : index
    %6 = vector.load %arg3[%c0_4, %c0_5] : memref<64x32xbf16, #tpu.memory_space<vmem>>, vector<64x32xbf16>
    %cst = arith.constant dense<0.000000e+00> : vector<8x32xf32>
    %7 = tpu.matmul %5, %6, %cst {dimension_numbers = #tpu.dot_dimension_numbers<[1], [0], [0], [1], [0, 0, 1, 1], [], []>} : vector<8x64xbf16>, vector<64x32xbf16>, vector<8x32xf32> -> vector<8x32xf32>
    %8 = arith.addf %3, %7 : vector<8x32xf32>
    %c0_6 = arith.constant 0 : index
    %c0_7 = arith.constant 0 : index
    %9 = vector.load %arg10[%c0_6, %c0_7] : memref<8x32xf32, #tpu.memory_space<vmem>>, vector<8x32xf32>
    tpu.vector_store %arg10[%c0_6, %c0_7], %8 {strides = array<i32>} : memref<8x32xf32, #tpu.memory_space<vmem>>, vector<8x32xf32>,
    %c0_i32_8 = arith.constant 0 : i32
    %10 = arith.cmpi eq, %arg1, %c0_i32_8 : i32
    %11 = arith.extui %10 : i1 to i32
    %c0_i32_9 = arith.constant 0 : i32
    %12 = arith.cmpi ne, %11, %c0_i32_9 : i32
    scf.if %12 {
      %c0_10 = arith.constant 0 : index
      %c0_11 = arith.constant 0 : index
      %13 = vector.load %arg10[%c0_10, %c0_11] : memref<8x32xf32, #tpu.memory_space<vmem>>, vector<8x32xf32>
      %c0_12 = arith.constant 0 : index
      %c0_13 = arith.constant 0 : index
      %14 = vector.load %arg4[%c0_12, %c0_13] : memref<1x32xf32, #tpu.memory_space<vmem>>, vector<1x32xf32>
      %15 = vector.broadcast %14 : vector<1x32xf32> to vector<8x32xf32>
      %16 = arith.addf %13, %15 : vector<8x32xf32>
      %cst_14 = arith.constant 0.000000e+00 : f32
      %17 = vector.broadcast %cst_14 : f32 to vector<8x32xf32>
      %18 = arith.maximumf %16, %17 : vector<8x32xf32>
      %19 = arith.truncf %18 : vector<8x32xf32> to vector<8x32xbf16>
      %c0_15 = arith.constant 0 : index
      %c0_16 = arith.constant 0 : index
      %20 = vector.load %arg5[%c0_15, %c0_16] : memref<32x32xbf16, #tpu.memory_space<vmem>>, vector<32x32xbf16>
      %cst_17 = arith.constant dense<0.000000e+00> : vector<8x32xf32>
      %21 = tpu.matmul %19, %20, %cst_17 {dimension_numbers = #tpu.dot_dimension_numbers<[1], [0], [0], [1], [0, 0, 1, 1], [], []>} : vector<8x32xbf16>, vector<32x32xbf16>, vector<8x32xf32> -> vector<8x32xf32>
      %c0_18 = arith.constant 0 : index
      %c0_19 = arith.constant 0 : index
      %22 = vector.load %arg6[%c0_18, %c0_19] : memref<1x32xf32, #tpu.memory_space<vmem>>, vector<1x32xf32>
      %23 = vector.broadcast %22 : vector<1x32xf32> to vector<8x32xf32>
      %24 = arith.addf %21, %23 : vector<8x32xf32>
      %cst_20 = arith.constant 0.000000e+00 : f32
      %25 = vector.broadcast %cst_20 : f32 to vector<8x32xf32>
      %26 = arith.maximumf %24, %25 : vector<8x32xf32>
      %27 = arith.truncf %26 : vector<8x32xf32> to vector<8x32xbf16>
      %c0_21 = arith.constant 0 : index
      %c0_22 = arith.constant 0 : index
      %28 = vector.load %arg7[%c0_21, %c0_22] : memref<32x128xbf16, #tpu.memory_space<vmem>>, vector<32x128xbf16>
      %cst_23 = arith.constant dense<0.000000e+00> : vector<8x128xf32>
      %29 = tpu.matmul %27, %28, %cst_23 {dimension_numbers = #tpu.dot_dimension_numbers<[1], [0], [0], [1], [0, 0, 1, 1], [], []>} : vector<8x32xbf16>, vector<32x128xbf16>, vector<8x128xf32> -> vector<8x128xf32>
      %c0_24 = arith.constant 0 : index
      %c0_25 = arith.constant 0 : index
      %30 = vector.load %arg8[%c0_24, %c0_25] : memref<1x128xf32, #tpu.memory_space<vmem>>, vector<1x128xf32>
      %31 = vector.broadcast %30 : vector<1x128xf32> to vector<8x128xf32>
      %32 = arith.addf %29, %31 : vector<8x128xf32>
      %c0_26 = arith.constant 0 : index
      %c0_27 = arith.constant 0 : index
      %33 = vector.load %arg9[%c0_26, %c0_27] : memref<8x128xf32, #tpu.memory_space<vmem>>, vector<8x128xf32>
      tpu.vector_store %arg9[%c0_26, %c0_27], %32 {strides = array<i32>} : memref<8x128xf32, #tpu.memory_space<vmem>>, vector<8x128xf32>,
    } else {
    }
    return
  }
  func.func @transform_0(%arg0: i32, %arg1: i32) -> (i32, i32) {
    %c0_i32 = arith.constant 0 : i32
    return %arg0, %arg1 : i32, i32
  }
  func.func @transform_1(%arg0: i32, %arg1: i32) -> (i32, i32) {
    %c0_i32 = arith.constant 0 : i32
    %c0_i32_0 = arith.constant 0 : i32
    return %arg1, %c0_i32 : i32, i32
  }
  func.func @transform_2(%arg0: i32, %arg1: i32) -> (i32, i32) {
    %c0_i32 = arith.constant 0 : i32
    %c0_i32_0 = arith.constant 0 : i32
    %c0_i32_1 = arith.constant 0 : i32
    return %c0_i32, %c0_i32_0 : i32, i32
  }
  func.func @transform_3(%arg0: i32, %arg1: i32) -> (i32, i32) {
    %c0_i32 = arith.constant 0 : i32
    %c0_i32_0 = arith.constant 0 : i32
    %c0_i32_1 = arith.constant 0 : i32
    return %c0_i32, %c0_i32_0 : i32, i32
  }
  func.func @transform_4(%arg0: i32, %arg1: i32) -> (i32, i32) {
    %c0_i32 = arith.constant 0 : i32
    %c0_i32_0 = arith.constant 0 : i32
    %c0_i32_1 = arith.constant 0 : i32
    return %c0_i32, %c0_i32_0 : i32, i32
  }
  func.func @transform_5(%arg0: i32, %arg1: i32) -> (i32, i32) {
    %c0_i32 = arith.constant 0 : i32
    %c0_i32_0 = arith.constant 0 : i32
    %c0_i32_1 = arith.constant 0 : i32
    return %c0_i32, %c0_i32_0 : i32, i32
  }
  func.func @transform_6(%arg0: i32, %arg1: i32) -> (i32, i32) {
    %c0_i32 = arith.constant 0 : i32
    %c0_i32_0 = arith.constant 0 : i32
    %c0_i32_1 = arith.constant 0 : i32
    return %c0_i32, %c0_i32_0 : i32, i32
  }
  func.func @transform_7(%arg0: i32, %arg1: i32) -> (i32, i32) {
    %c0_i32 = arith.constant 0 : i32
    %c0_i32_0 = arith.constant 0 : i32
    return %arg0, %c0_i32 : i32, i32
  }
}

module attributes {stable_mosaic.version = 11 : i64} {
  func.func @fast_rcnn_predictor_kernel(%arg0: i32, %arg1: i32, %arg2: memref<8x64xf32, #tpu.memory_space<vmem>>, %arg3: memref<64x32xbf16, #tpu.memory_space<vmem>>, %arg4: memref<1x32xf32, #tpu.memory_space<vmem>>, %arg5: memref<32x32xbf16, #tpu.memory_space<vmem>>, %arg6: memref<1x32xf32, #tpu.memory_space<vmem>>, %arg7: memref<32x128xbf16, #tpu.memory_space<vmem>>, %arg8: memref<1x128xf32, #tpu.memory_space<vmem>>, %arg9: memref<8x128xf32, #tpu.memory_space<vmem>>, %arg10: memref<8x32xf32, #tpu.memory_space<vmem>>) attributes {dimension_semantics = [#tpu.dimension_semantics<parallel>, #tpu.dimension_semantics<arbitrary>], iteration_bounds = array<i64: 1, 1>, scalar_prefetch = 0 : i64, scratch_operands = 1 : i64, tpu.core_type = #tpu.core_type<tc>, window_params = [{transform_indices = @transform_0, window_bounds = array<i64: 8, 64>}, {transform_indices = @transform_1, window_bounds = array<i64: 64, 32>}, {pipeline_mode = #tpu.pipeline_mode<synchronous>, transform_indices = @transform_2, window_bounds = array<i64: 1, 32>}, {pipeline_mode = #tpu.pipeline_mode<synchronous>, transform_indices = @transform_3, window_bounds = array<i64: 32, 32>}, {pipeline_mode = #tpu.pipeline_mode<synchronous>, transform_indices = @transform_4, window_bounds = array<i64: 1, 32>}, {pipeline_mode = #tpu.pipeline_mode<synchronous>, transform_indices = @transform_5, window_bounds = array<i64: 32, 128>}, {pipeline_mode = #tpu.pipeline_mode<synchronous>, transform_indices = @transform_6, window_bounds = array<i64: 1, 128>}, {transform_indices = @transform_7, window_bounds = array<i64: 8, 128>}]} {
    %c0_i32 = arith.constant 0 : i32
    %0 = arith.cmpi eq, %arg1, %c0_i32 : i32
    %1 = arith.extui %0 : i1 to i32
    %c0_i32_0 = arith.constant 0 : i32
    %2 = arith.cmpi ne, %1, %c0_i32_0 : i32
    scf.if %2 {
      %cst_10 = arith.constant 0.000000e+00 : f32
      %13 = vector.broadcast %cst_10 : f32 to vector<8x32xf32>
      %c0_11 = arith.constant 0 : index
      %c0_12 = arith.constant 0 : index
      %14 = vector.load %arg10[%c0_11, %c0_12] : memref<8x32xf32, #tpu.memory_space<vmem>>, vector<8x32xf32>
      tpu.vector_store %arg10[%c0_11, %c0_12], %13 {strides = array<i32>} : memref<8x32xf32, #tpu.memory_space<vmem>>, vector<8x32xf32>,
    } else {
    }
    %c0 = arith.constant 0 : index
    %c0_1 = arith.constant 0 : index
    %3 = vector.load %arg10[%c0, %c0_1] : memref<8x32xf32, #tpu.memory_space<vmem>>, vector<8x32xf32>
    %c0_2 = arith.constant 0 : index
    %c0_3 = arith.constant 0 : index
    %4 = vector.load %arg2[%c0_2, %c0_3] : memref<8x64xf32, #tpu.memory_space<vmem>>, vector<8x64xf32>
    %5 = arith.truncf %4 : vector<8x64xf32> to vector<8x64xbf16>
    %c0_4 = arith.constant 0 : index
    %c0_5 = arith.constant 0 : index
    %6 = vector.load %arg3[%c0_4, %c0_5] : memref<64x32xbf16, #tpu.memory_space<vmem>>, vector<64x32xbf16>
    %cst = arith.constant dense<0.000000e+00> : vector<8x32xf32>
    %7 = tpu.matmul %5, %6, %cst {dimension_numbers = #tpu.dot_dimension_numbers<[1], [0], [0], [1], [0, 0, 1, 1], [], []>} : vector<8x64xbf16>, vector<64x32xbf16>, vector<8x32xf32> -> vector<8x32xf32>
    %8 = arith.addf %3, %7 : vector<8x32xf32>
    %c0_6 = arith.constant 0 : index
    %c0_7 = arith.constant 0 : index
    %9 = vector.load %arg10[%c0_6, %c0_7] : memref<8x32xf32, #tpu.memory_space<vmem>>, vector<8x32xf32>
    tpu.vector_store %arg10[%c0_6, %c0_7], %8 {strides = array<i32>} : memref<8x32xf32, #tpu.memory_space<vmem>>, vector<8x32xf32>,
    %c0_i32_8 = arith.constant 0 : i32
    %10 = arith.cmpi eq, %arg1, %c0_i32_8 : i32
    %11 = arith.extui %10 : i1 to i32
    %c0_i32_9 = arith.constant 0 : i32
    %12 = arith.cmpi ne, %11, %c0_i32_9 : i32
    scf.if %12 {
      %c0_10 = arith.constant 0 : index
      %c0_11 = arith.constant 0 : index
      %13 = vector.load %arg10[%c0_10, %c0_11] : memref<8x32xf32, #tpu.memory_space<vmem>>, vector<8x32xf32>
      %c0_12 = arith.constant 0 : index
      %c0_13 = arith.constant 0 : index
      %14 = vector.load %arg4[%c0_12, %c0_13] : memref<1x32xf32, #tpu.memory_space<vmem>>, vector<1x32xf32>
      %15 = vector.broadcast %14 : vector<1x32xf32> to vector<8x32xf32>
      %16 = arith.addf %13, %15 : vector<8x32xf32>
      %cst_14 = arith.constant 0.000000e+00 : f32
      %17 = vector.broadcast %cst_14 : f32 to vector<8x32xf32>
      %18 = arith.maximumf %16, %17 : vector<8x32xf32>
      %19 = arith.truncf %18 : vector<8x32xf32> to vector<8x32xbf16>
      %c0_15 = arith.constant 0 : index
      %c0_16 = arith.constant 0 : index
      %20 = vector.load %arg5[%c0_15, %c0_16] : memref<32x32xbf16, #tpu.memory_space<vmem>>, vector<32x32xbf16>
      %cst_17 = arith.constant dense<0.000000e+00> : vector<8x32xf32>
      %21 = tpu.matmul %19, %20, %cst_17 {dimension_numbers = #tpu.dot_dimension_numbers<[1], [0], [0], [1], [0, 0, 1, 1], [], []>} : vector<8x32xbf16>, vector<32x32xbf16>, vector<8x32xf32> -> vector<8x32xf32>
      %c0_18 = arith.constant 0 : index
      %c0_19 = arith.constant 0 : index
      %22 = vector.load %arg6[%c0_18, %c0_19] : memref<1x32xf32, #tpu.memory_space<vmem>>, vector<1x32xf32>
      %23 = vector.broadcast %22 : vector<1x32xf32> to vector<8x32xf32>
      %24 = arith.addf %21, %23 : vector<8x32xf32>
      %cst_20 = arith.constant 0.000000e+00 : f32
      %25 = vector.broadcast %cst_20 : f32 to vector<8x32xf32>
      %26 = arith.maximumf %24, %25 : vector<8x32xf32>
      %27 = arith.truncf %26 : vector<8x32xf32> to vector<8x32xbf16>
      %c0_21 = arith.constant 0 : index
      %c0_22 = arith.constant 0 : index
      %28 = vector.load %arg7[%c0_21, %c0_22] : memref<32x128xbf16, #tpu.memory_space<vmem>>, vector<32x128xbf16>
      %cst_23 = arith.constant dense<0.000000e+00> : vector<8x128xf32>
      %29 = tpu.matmul %27, %28, %cst_23 {dimension_numbers = #tpu.dot_dimension_numbers<[1], [0], [0], [1], [0, 0, 1, 1], [], []>} : vector<8x32xbf16>, vector<32x128xbf16>, vector<8x128xf32> -> vector<8x128xf32>
      %c0_24 = arith.constant 0 : index
      %c0_25 = arith.constant 0 : index
      %30 = vector.load %arg8[%c0_24, %c0_25] : memref<1x128xf32, #tpu.memory_space<vmem>>, vector<1x128xf32>
      %31 = vector.broadcast %30 : vector<1x128xf32> to vector<8x128xf32>
      %32 = arith.addf %29, %31 : vector<8x128xf32>
      %c0_26 = arith.constant 0 : index
      %c0_27 = arith.constant 0 : index
      %33 = vector.load %arg9[%c0_26, %c0_27] : memref<8x128xf32, #tpu.memory_space<vmem>>, vector<8x128xf32>
      tpu.vector_store %arg9[%c0_26, %c0_27], %32 {strides = array<i32>} : memref<8x128xf32, #tpu.memory_space<vmem>>, vector<8x128xf32>,
    } else {
    }
    return
  }
  func.func @transform_0(%arg0: i32, %arg1: i32) -> (i32, i32) {
    %c0_i32 = arith.constant 0 : i32
    return %arg0, %arg1 : i32, i32
  }
  func.func @transform_1(%arg0: i32, %arg1: i32) -> (i32, i32) {
    %c0_i32 = arith.constant 0 : i32
    %c0_i32_0 = arith.constant 0 : i32
    return %arg1, %c0_i32 : i32, i32
  }
  func.func @transform_2(%arg0: i32, %arg1: i32) -> (i32, i32) {
    %c0_i32 = arith.constant 0 : i32
    %c0_i32_0 = arith.constant 0 : i32
    %c0_i32_1 = arith.constant 0 : i32
    return %c0_i32, %c0_i32_0 : i32, i32
  }
  func.func @transform_3(%arg0: i32, %arg1: i32) -> (i32, i32) {
    %c0_i32 = arith.constant 0 : i32
    %c0_i32_0 = arith.constant 0 : i32
    %c0_i32_1 = arith.constant 0 : i32
    return %c0_i32, %c0_i32_0 : i32, i32
  }
  func.func @transform_4(%arg0: i32, %arg1: i32) -> (i32, i32) {
    %c0_i32 = arith.constant 0 : i32
    %c0_i32_0 = arith.constant 0 : i32
    %c0_i32_1 = arith.constant 0 : i32
    return %c0_i32, %c0_i32_0 : i32, i32
  }
  func.func @transform_5(%arg0: i32, %arg1: i32) -> (i32, i32) {
    %c0_i32 = arith.constant 0 : i32
    %c0_i32_0 = arith.constant 0 : i32
    %c0_i32_1 = arith.constant 0 : i32
    return %c0_i32, %c0_i32_0 : i32, i32
  }
  func.func @transform_6(%arg0: i32, %arg1: i32) -> (i32, i32) {
    %c0_i32 = arith.constant 0 : i32
    %c0_i32_0 = arith.constant 0 : i32
    %c0_i32_1 = arith.constant 0 : i32
    return %c0_i32, %c0_i32_0 : i32, i32
  }
  func.func @transform_7(%arg0: i32, %arg1: i32) -> (i32, i32) {
    %c0_i32 = arith.constant 0 : i32
    %c0_i32_0 = arith.constant 0 : i32
    return %arg0, %c0_i32 : i32, i32
  }
}

</mosaic_0001>

<llo_original>
// kernel: tpu_custom_call.1
$region0: #{tpu_custom_call.1}
  #allocation0 [shape = 'u32[]', space=smem, size = 0x4, offset = 0x4, fixed_abs, tag = 'smem constant byte address 0x4 - core index']
  #allocation1 [shape = 'u32[144,128]{1,0:T(1,128)}', space=vmem, size = 0x12000, scoped, tag = 'internal scratch']
  #allocation2 [shape = 'f32[8,32]{1,0:T(8,128)}', space=vmem, size = 0x1000, scoped, tag = 'scratch operand']
  %s0 = inlined_call_operand.vmem [shape: f32[8,64], index: 0, kind: input, shape index: {}]
  %s1 = inlined_call_operand.vmem [shape: bf16[64,32], index: 1, kind: input, shape index: {}]
  %s2 = inlined_call_operand.vmem [shape: f32[1,32], index: 2, kind: input, shape index: {}]
  %s3 = inlined_call_operand.vmem [shape: bf16[32,32], index: 3, kind: input, shape index: {}]
  %s4 = inlined_call_operand.vmem [shape: f32[1,32], index: 4, kind: input, shape index: {}]
  %s5 = inlined_call_operand.vmem [shape: bf16[32,128], index: 5, kind: input, shape index: {}]
  %s6 = inlined_call_operand.vmem [shape: f32[1,128], index: 6, kind: input, shape index: {}]
  %s7 = inlined_call_operand.hbm [shape: f32[8,128], index: 7, kind: output, shape index: {}]
  %s8 = sld [smem:[#allocation0]]
  $region46: #{tpu_custom_call.1} parent=0
    _
  %s10 = ssub.s32 1, %s8
  %s11 = scalar_select 0, %s10, %s8
  $region1: #{tpu_custom_call.1} parent=0
    #allocation3 [shape = 'u8[4096]{0}', space=vmem, size = 0x1000, scoped, tag = 'output window, operand 0, single buffered']
    #allocation4 [shape = 's32[1]{0}', space=sflag, size = 0x4, scoped, tag = 'scoped memory for tpu_custom_call.1']
    %12 = vsyncpa [#allocation4], 0
    // Predicated region
    $region2: #{tpu_custom_call.1} parent=1 // pred_check
      _
    $region3: #{tpu_custom_call.1} parent=1 // pred_check_branch
      %14 = sbr.rel (0) target = $region5
    $region4: #{tpu_custom_call.1} parent=1 // pred_region
      _
    $region5: #{tpu_custom_call.1} parent=1 // pred_fallthru
      _
    // Predicated region
    $region6: #{tpu_custom_call.1} parent=1 // pred_check
      _
    $region7: #{tpu_custom_call.1} parent=1 // pred_check_branch
      %16 = sbr.rel (0) target = $region9
    $region8: #{tpu_custom_call.1} parent=1 // pred_region
      _
    $region9: #{tpu_custom_call.1} parent=1 // pred_fallthru
      _
    // Predicated region
    $region10: #{tpu_custom_call.1} parent=1 // pred_check
      _
    $region11: #{tpu_custom_call.1} parent=1 // pred_check_branch
      %18 = sbr.rel (0) target = $region13
    $region12: #{tpu_custom_call.1} parent=1 // pred_region
      _
    $region13: #{tpu_custom_call.1} parent=1 // pred_fallthru
      _
    // Predicated region
    $region14: #{tpu_custom_call.1} parent=1 // pred_check
      _
    $region15: #{tpu_custom_call.1} parent=1 // pred_check_branch
      %20 = sbr.rel (0) target = $region17
    $region16: #{tpu_custom_call.1} parent=1 // pred_region
      _
    $region17: #{tpu_custom_call.1} parent=1 // pred_fallthru
      _
    // Predicated region
    $region18: #{tpu_custom_call.1} parent=1 // pred_check
      _
    $region19: #{tpu_custom_call.1} parent=1 // pred_check_branch
      %22 = sbr.rel (0) target = $region21
    $region20: #{tpu_custom_call.1} parent=1 // pred_region
      _
    $region21: #{tpu_custom_call.1} parent=1 // pred_fallthru
      _
    // Predicated region
    $region22: #{tpu_custom_call.1} parent=1 // pred_check
      _
    $region23: #{tpu_custom_call.1} parent=1 // pred_check_branch
      %24 = sbr.rel (0) target = $region25
    $region24: #{tpu_custom_call.1} parent=1 // pred_region
      _
    $region25: #{tpu_custom_call.1} parent=1 // pred_fallthru
      _
    // Predicated region
    $region26: #{tpu_custom_call.1} parent=1 // pred_check
      _
    $region27: #{tpu_custom_call.1} parent=1 // pred_check_branch
      %26 = sbr.rel (0) target = $region29
    $region28: #{tpu_custom_call.1} parent=1 // pred_region
      _
    $region29: #{tpu_custom_call.1} parent=1 // pred_fallthru
      _
    %p28 = scmp.eq.s32.totalorder 0, 0
    // Predicated region
    $region30: #{tpu_custom_call.1} parent=1 // pred_check
      %p29 = pneg %p28
    $region31: #{tpu_custom_call.1} parent=1 // pred_check_branch
      %31 = sbr.rel (%p29) target = $region33
    $region32: #{tpu_custom_call.1} parent=1 // pred_region
      %vm32 = vcmask 261120
      %33 = vst.msk [vmem:[#allocation2] sm:$0xff] %vm32, 0.0
    $region33: #{tpu_custom_call.1} parent=1 // pred_fallthru
      _
    %v34 = vld [vmem:[#allocation2] sm:$0xff]
    %v35 = vld [vmem:[%s0] sm:$0xff]
    %v36 = vpack.c.bf16 %v35, %v35
    %v37 = vld [vmem:[%s1] sm:$0xf]
    %v38 = vld [vmem:[%s1 + $0x4] sm:$0xf]
    %v39 = vld [vmem:[%s1 + $0x8] sm:$0xf]
    %v40 = vld [vmem:[%s1 + $0xc] sm:$0xf]
    %v41 = vld [vmem:[%s1 + $0x10] sm:$0xf]
    %v42 = vld [vmem:[%s1 + $0x14] sm:$0xf]
    %v43 = vld [vmem:[%s1 + $0x18] sm:$0xf]
    %v44 = vld [vmem:[%s1 + $0x1c] sm:$0xf]
    %v53 = vunpack.c.l.b16 %v37
    %v54 = vunpack.c.l.b16 %v38
    %v55 = vunpack.c.l.b16 %v39
    %v56 = vunpack.c.l.b16 %v40
    %v57 = vunpack.c.l.b16 %v41
    %v58 = vunpack.c.l.b16 %v42
    %v59 = vunpack.c.l.b16 %v43
    %v60 = vunpack.c.l.b16 %v44
    %v61 = vpack.c.b16 %v54, %v53
    %v62 = vpack.c.b16 %v56, %v55
    %v63 = vpack.c.b16 %v58, %v57
    %v64 = vpack.c.b16 %v60, %v59
    %vm69 = vcmask 523264
    %v71 = vsel %vm69, %v36, 0
    %73 = vmatprep.subr.bf16.mxu0 0
    %74 = vmatpush1.bf16.msra.mxu0 %v61
    %75 = vmatprep.subr.bf16.mxu0 0
    %76 = vmatpush1.bf16.msra.mxu0 %v62
    %77 = vmatprep.subr.bf16.mxu0 0
    %78 = vmatpush1.bf16.msra.mxu0 %v63
    %79 = vmatprep.subr.bf16.mxu0 0
    %80 = vmatpush1.bf16.msra.mxu0 %v64
    %81 = vmatprep.subr.bf16.mxu0 0
    %82 = vmatpush1.bf16.msra.mxu0 0
    %83 = vmatprep.subr.bf16.mxu0 0
    %84 = vmatpush1.bf16.msra.mxu0 0
    %85 = vmatprep.subr.bf16.mxu0 0
    %86 = vmatpush1.bf16.msra.mxu0 0
    %87 = vmatprep.subr.bf16.mxu0 0
    %88 = vmatpush1.bf16.msra.mxu0 0
    %89 = vmatprep.subr.bf16.mxu0 0
    %90 = vmatpush1.bf16.msra.mxu0 0
    %91 = vmatprep.subr.bf16.mxu0 0
    %92 = vmatpush1.bf16.msra.mxu0 0
    %93 = vmatprep.subr.bf16.mxu0 0
    %94 = vmatpush1.bf16.msra.mxu0 0
    %95 = vmatprep.subr.bf16.mxu0 0
    %96 = vmatpush1.bf16.msra.mxu0 0
    %97 = vmatprep.subr.bf16.mxu0 0
    %98 = vmatpush1.bf16.msra.mxu0 0
    %99 = vmatprep.subr.bf16.mxu0 0
    %100 = vmatpush1.bf16.msra.mxu0 0
    %101 = vmatprep.subr.bf16.mxu0 0
    %102 = vmatpush1.bf16.msra.mxu0 0
    %103 = vmatprep.subr.bf16.mxu0 0
    %104 = vmatpush1.bf16.msra.mxu0 0
    %105 = vmatprep.mubr.bf16.mxu0 0
    %106 = vmatmul.mubr.bf16.gmra.mrb[0].mxu0 %v71
    %v107 = vpop.f32.mrb[0].mxu0
    %v108 = vadd.f32 0.0, %v107
    %v109 = vpop.f32.mrb[0].mxu0
    %v110 = vpop.f32.mrb[0].mxu0
    %v111 = vpop.f32.mrb[0].mxu0
    %112 = vdwg.mxu0
    %v113 = vadd.f32 %v34, %v108
    %vm114 = vcmask 261120
    %115 = vst.msk [vmem:[#allocation2] sm:$0xff] %vm114, %v113
    // Predicated region
    $region34: #{tpu_custom_call.1} parent=1 // pred_check
      %p116 = pneg %p28
    $region35: #{tpu_custom_call.1} parent=1 // pred_check_branch
      %118 = sbr.rel (%p116) target = $region37
    $region36: #{tpu_custom_call.1} parent=1 // pred_region
      %v119 = vld [vmem:[#allocation2] sm:$0xff]
      %v120 = vld [vmem:[%s2] sm:$0x1]
      %v122 = vlaneseq
      %v123 = vshrl.u32 %v122, 7
      %v124 = vsub.s32 0, %v123
      %v125 = vrot.slane %v120, %v124
      %v127 = vadd.f32 %v119, %v125
      %v128 = vmax.f32 %v127, 0.0
      %v129 = vpack.c.bf16 %v128, %v128
      %v130 = vld [vmem:[%s3] sm:$0xf]
      %v131 = vld [vmem:[%s3 + $0x4] sm:$0xf]
      %v132 = vld [vmem:[%s3 + $0x8] sm:$0xf]
      %v133 = vld [vmem:[%s3 + $0xc] sm:$0xf]
      %v134 = vld [vmem:[%s4] sm:$0x1]
      %v136 = vlaneseq
      %v137 = vshrl.u32 %v136, 7
      %v138 = vsub.s32 0, %v137
      %v139 = vrot.slane %v134, %v138
      %v145 = vunpack.c.l.b16 %v130
      %v146 = vunpack.c.l.b16 %v131
      %v147 = vunpack.c.l.b16 %v132
      %v148 = vunpack.c.l.b16 %v133
      %v149 = vpack.c.b16 %v146, %v145
      %v150 = vpack.c.b16 %v148, %v147
      %v154 = vsel %vm114, %v129, 0
      %156 = vmatprep.subr.bf16.mxu0 0
      %157 = vmatpush1.bf16.msra.mxu0 %v149
      %158 = vmatprep.subr.bf16.mxu0 0
      %159 = vmatpush1.bf16.msra.mxu0 %v150
      %160 = vmatprep.subr.bf16.mxu0 0
      %161 = vmatpush1.bf16.msra.mxu0 0
      %162 = vmatprep.subr.bf16.mxu0 0
      %163 = vmatpush1.bf16.msra.mxu0 0
      %164 = vmatprep.subr.bf16.mxu0 0
      %165 = vmatpush1.bf16.msra.mxu0 0
      %166 = vmatprep.subr.bf16.mxu0 0
      %167 = vmatpush1.bf16.msra.mxu0 0
      %168 = vmatprep.subr.bf16.mxu0 0
      %169 = vmatpush1.bf16.msra.mxu0 0
      %170 = vmatprep.subr.bf16.mxu0 0
      %171 = vmatpush1.bf16.msra.mxu0 0
      %172 = vmatprep.subr.bf16.mxu0 0
      %173 = vmatpush1.bf16.msra.mxu0 0
      %174 = vmatprep.subr.bf16.mxu0 0
      %175 = vmatpush1.bf16.msra.mxu0 0
      %176 = vmatprep.subr.bf16.mxu0 0
      %177 = vmatpush1.bf16.msra.mxu0 0
      %178 = vmatprep.subr.bf16.mxu0 0
      %179 = vmatpush1.bf16.msra.mxu0 0
      %180 = vmatprep.subr.bf16.mxu0 0
      %181 = vmatpush1.bf16.msra.mxu0 0
      %182 = vmatprep.subr.bf16.mxu0 0
      %183 = vmatpush1.bf16.msra.mxu0 0
      %184 = vmatprep.subr.bf16.mxu0 0
      %185 = vmatpush1.bf16.msra.mxu0 0
      %186 = vmatprep.subr.bf16.mxu0 0
      %187 = vmatpush1.bf16.msra.mxu0 0
      %188 = vmatprep.mubr.bf16.mxu0 0
      %189 = vmatmul.mubr.bf16.gmra.mrb[0].mxu0 %v154
      %v190 = vpop.f32.mrb[0].mxu0
      %v191 = vadd.f32 %v139, %v190
      %v192 = vpop.f32.mrb[0].mxu0
      %v193 = vpop.f32.mrb[0].mxu0
      %v194 = vpop.f32.mrb[0].mxu0
      %195 = vdwg.mxu0
      %v196 = vmax.f32 %v191, 0.0
      %v197 = vpack.c.bf16 %v196, %v196
      %v198 = vld [vmem:[%s5] sm:$0xf]
      %v199 = vld [vmem:[%s5 + $0x4] sm:$0xf]
      %v200 = vld [vmem:[%s5 + $0x8] sm:$0xf]
      %v201 = vld [vmem:[%s5 + $0xc] sm:$0xf]
      %v202 = vld [vmem:[%s6] sm:$0x1]
      %v204 = vlaneseq
      %v205 = vshrl.u32 %v204, 7
      %v206 = vsub.s32 0, %v205
      %v207 = vrot.slane %v202, %v206
      %v213 = vunpack.c.l.b16 %v198
      %v214 = vunpack.c.l.b16 %v199
      %v215 = vunpack.c.l.b16 %v200
      %v216 = vunpack.c.l.b16 %v201
      %v217 = vpack.c.b16 %v214, %v213
      %v218 = vpack.c.b16 %v216, %v215
      %v222 = vsel %vm114, %v197, 0
      %224 = vmatprep.subr.bf16.mxu0 0
      %225 = vmatpush1.bf16.msra.mxu0 %v217
      %226 = vmatprep.subr.bf16.mxu0 0
      %227 = vmatpush1.bf16.msra.mxu0 %v218
      %228 = vmatprep.subr.bf16.mxu0 0
      %229 = vmatpush1.bf16.msra.mxu0 0
      %230 = vmatprep.subr.bf16.mxu0 0
      %231 = vmatpush1.bf16.msra.mxu0 0
      %232 = vmatprep.subr.bf16.mxu0 0
      %233 = vmatpush1.bf16.msra.mxu0 0
      %234 = vmatprep.subr.bf16.mxu0 0
      %235 = vmatpush1.bf16.msra.mxu0 0
      %236 = vmatprep.subr.bf16.mxu0 0
      %237 = vmatpush1.bf16.msra.mxu0 0
      %238 = vmatprep.subr.bf16.mxu0 0
      %239 = vmatpush1.bf16.msra.mxu0 0
      %240 = vmatprep.subr.bf16.mxu0 0
      %241 = vmatpush1.bf16.msra.mxu0 0
      %242 = vmatprep.subr.bf16.mxu0 0
      %243 = vmatpush1.bf16.msra.mxu0 0
      %244 = vmatprep.subr.bf16.mxu0 0
      %245 = vmatpush1.bf16.msra.mxu0 0
      %246 = vmatprep.subr.bf16.mxu0 0
      %247 = vmatpush1.bf16.msra.mxu0 0
      %248 = vmatprep.subr.bf16.mxu0 0
      %249 = vmatpush1.bf16.msra.mxu0 0
      %250 = vmatprep.subr.bf16.mxu0 0
      %251 = vmatpush1.bf16.msra.mxu0 0
      %252 = vmatprep.subr.bf16.mxu0 0
      %253 = vmatpush1.bf16.msra.mxu0 0
      %254 = vmatprep.subr.bf16.mxu0 0
      %255 = vmatpush1.bf16.msra.mxu0 0
      %256 = vmatprep.mubr.bf16.mxu0 0
      %257 = vmatmul.mubr.bf16.gmra.mrb[0].mxu0 %v222
      %v258 = vpop.f32.mrb[0].mxu0
      %v259 = vadd.f32 %v207, %v258
      %v260 = vpop.f32.mrb[0].mxu0
      %v261 = vpop.f32.mrb[0].mxu0
      %v262 = vpop.f32.mrb[0].mxu0
      %263 = vdwg.mxu0
      %264 = vst [vmem:[#allocation3] sm:$0xff] %v259
    $region37: #{tpu_custom_call.1} parent=1 // pred_fallthru
      _
    // Predicated region
    $region38: #{tpu_custom_call.1} parent=1 // pred_check
      _
    $region39: #{tpu_custom_call.1} parent=1 // pred_check_branch
      %266 = sbr.rel (0) target = $region41
    $region40: #{tpu_custom_call.1} parent=1 // pred_region
      %s268 = ssub.s32 128, 128
      %269 = vsyncadd [#allocation4], %s268
      %s271 = sshll.u32 [#allocation3], 4
      %s272 = int_to_ptr.vmem [resolvable:$true] %s271
      %274 = dma.vmem_to_hbm [thread:$0]  %s272, 128, %s7, [#allocation4]
    $region41: #{tpu_custom_call.1} parent=1 // pred_fallthru
      _
    // Predicated region
    $region42: #{tpu_custom_call.1} parent=1 // pred_check
      _
    $region43: #{tpu_custom_call.1} parent=1 // pred_check_branch
      %276 = sbr.rel (0) target = $region45
    $region44: #{tpu_custom_call.1} parent=1 // pred_region
      %277 = dma.done [#allocation4], 128
    $region45: #{tpu_custom_call.1} parent=1 // pred_fallthru
      _
    %278 = vsyncpa [#allocation4], 1

// kernel: tpu_custom_call.1
$region0: #{tpu_custom_call.1}
  #allocation0 [shape = 'u32[]', space=smem, size = 0x4, offset = 0x4, fixed_abs, tag = 'smem constant byte address 0x4 - core index']
  #allocation1 [shape = 'u32[144,128]{1,0:T(1,128)}', space=vmem, size = 0x12000, scoped, tag = 'internal scratch']
  #allocation2 [shape = 'f32[8,32]{1,0:T(8,128)}', space=vmem, size = 0x1000, scoped, tag = 'scratch operand']
  %s0 = inlined_call_operand.vmem [shape: f32[8,64], index: 0, kind: input, shape index: {}]
  %s1 = inlined_call_operand.vmem [shape: bf16[64,32], index: 1, kind: input, shape index: {}]
  %s2 = inlined_call_operand.vmem [shape: f32[1,32], index: 2, kind: input, shape index: {}]
  %s3 = inlined_call_operand.vmem [shape: bf16[32,32], index: 3, kind: input, shape index: {}]
  %s4 = inlined_call_operand.vmem [shape: f32[1,32], index: 4, kind: input, shape index: {}]
  %s5 = inlined_call_operand.vmem [shape: bf16[32,128], index: 5, kind: input, shape index: {}]
  %s6 = inlined_call_operand.vmem [shape: f32[1,128], index: 6, kind: input, shape index: {}]
  %s7 = inlined_call_operand.hbm [shape: f32[8,128], index: 7, kind: output, shape index: {}]
  %s8 = sld [smem:[#allocation0]]
  $region46: #{tpu_custom_call.1} parent=0
    _
  %s10 = ssub.s32 1, %s8
  %s11 = scalar_select 0, %s10, %s8
  $region1: #{tpu_custom_call.1} parent=0
    #allocation3 [shape = 'u8[4096]{0}', space=vmem, size = 0x1000, scoped, tag = 'output window, operand 0, single buffered']
    #allocation4 [shape = 's32[1]{0}', space=sflag, size = 0x4, scoped, tag = 'scoped memory for tpu_custom_call.1']
    %12 = vsyncpa [#allocation4], 0
    // Predicated region
    $region2: #{tpu_custom_call.1} parent=1 // pred_check
      _
    $region3: #{tpu_custom_call.1} parent=1 // pred_check_branch
      %14 = sbr.rel (0) target = $region5
    $region4: #{tpu_custom_call.1} parent=1 // pred_region
      _
    $region5: #{tpu_custom_call.1} parent=1 // pred_fallthru
      _
    // Predicated region
    $region6: #{tpu_custom_call.1} parent=1 // pred_check
      _
    $region7: #{tpu_custom_call.1} parent=1 // pred_check_branch
      %16 = sbr.rel (0) target = $region9
    $region8: #{tpu_custom_call.1} parent=1 // pred_region
      _
    $region9: #{tpu_custom_call.1} parent=1 // pred_fallthru
      _
    // Predicated region
    $region10: #{tpu_custom_call.1} parent=1 // pred_check
      _
    $region11: #{tpu_custom_call.1} parent=1 // pred_check_branch
      %18 = sbr.rel (0) target = $region13
    $region12: #{tpu_custom_call.1} parent=1 // pred_region
      _
    $region13: #{tpu_custom_call.1} parent=1 // pred_fallthru
      _
    // Predicated region
    $region14: #{tpu_custom_call.1} parent=1 // pred_check
      _
    $region15: #{tpu_custom_call.1} parent=1 // pred_check_branch
      %20 = sbr.rel (0) target = $region17
    $region16: #{tpu_custom_call.1} parent=1 // pred_region
      _
    $region17: #{tpu_custom_call.1} parent=1 // pred_fallthru
      _
    // Predicated region
    $region18: #{tpu_custom_call.1} parent=1 // pred_check
      _
    $region19: #{tpu_custom_call.1} parent=1 // pred_check_branch
      %22 = sbr.rel (0) target = $region21
    $region20: #{tpu_custom_call.1} parent=1 // pred_region
      _
    $region21: #{tpu_custom_call.1} parent=1 // pred_fallthru
      _
    // Predicated region
    $region22: #{tpu_custom_call.1} parent=1 // pred_check
      _
    $region23: #{tpu_custom_call.1} parent=1 // pred_check_branch
      %24 = sbr.rel (0) target = $region25
    $region24: #{tpu_custom_call.1} parent=1 // pred_region
      _
    $region25: #{tpu_custom_call.1} parent=1 // pred_fallthru
      _
    // Predicated region
    $region26: #{tpu_custom_call.1} parent=1 // pred_check
      _
    $region27: #{tpu_custom_call.1} parent=1 // pred_check_branch
      %26 = sbr.rel (0) target = $region29
    $region28: #{tpu_custom_call.1} parent=1 // pred_region
      _
    $region29: #{tpu_custom_call.1} parent=1 // pred_fallthru
      _
    %p28 = scmp.eq.s32.totalorder 0, 0
    // Predicated region
    $region30: #{tpu_custom_call.1} parent=1 // pred_check
      %p29 = pneg %p28
    $region31: #{tpu_custom_call.1} parent=1 // pred_check_branch
      %31 = sbr.rel (%p29) target = $region33
    $region32: #{tpu_custom_call.1} parent=1 // pred_region
      %vm32 = vcmask 261120
      %33 = vst.msk [vmem:[#allocation2] sm:$0xff] %vm32, 0.0
    $region33: #{tpu_custom_call.1} parent=1 // pred_fallthru
      _
    %v34 = vld [vmem:[#allocation2] sm:$0xff]
    %v35 = vld [vmem:[%s0] sm:$0xff]
    %v36 = vpack.c.bf16 %v35, %v35
    %v37 = vld [vmem:[%s1] sm:$0xf]
    %v38 = vld [vmem:[%s1 + $0x4] sm:$0xf]
    %v39 = vld [vmem:[%s1 + $0x8] sm:$0xf]
    %v40 = vld [vmem:[%s1 + $0xc] sm:$0xf]
    %v41 = vld [vmem:[%s1 + $0x10] sm:$0xf]
    %v42 = vld [vmem:[%s1 + $0x14] sm:$0xf]
    %v43 = vld [vmem:[%s1 + $0x18] sm:$0xf]
    %v44 = vld [vmem:[%s1 + $0x1c] sm:$0xf]
    %v53 = vunpack.c.l.b16 %v37
    %v54 = vunpack.c.l.b16 %v38
    %v55 = vunpack.c.l.b16 %v39
    %v56 = vunpack.c.l.b16 %v40
    %v57 = vunpack.c.l.b16 %v41
    %v58 = vunpack.c.l.b16 %v42
    %v59 = vunpack.c.l.b16 %v43
    %v60 = vunpack.c.l.b16 %v44
    %v61 = vpack.c.b16 %v54, %v53
    %v62 = vpack.c.b16 %v56, %v55
    %v63 = vpack.c.b16 %v58, %v57
    %v64 = vpack.c.b16 %v60, %v59
    %vm69 = vcmask 523264
    %v71 = vsel %vm69, %v36, 0
    %73 = vmatprep.subr.bf16.mxu0 0
    %74 = vmatpush1.bf16.msra.mxu0 %v61
    %75 = vmatprep.subr.bf16.mxu0 0
    %76 = vmatpush1.bf16.msra.mxu0 %v62
    %77 = vmatprep.subr.bf16.mxu0 0
    %78 = vmatpush1.bf16.msra.mxu0 %v63
    %79 = vmatprep.subr.bf16.mxu0 0
    %80 = vmatpush1.bf16.msra.mxu0 %v64
    %81 = vmatprep.subr.bf16.mxu0 0
    %82 = vmatpush1.bf16.msra.mxu0 0
    %83 = vmatprep.subr.bf16.mxu0 0
    %84 = vmatpush1.bf16.msra.mxu0 0
    %85 = vmatprep.subr.bf16.mxu0 0
    %86 = vmatpush1.bf16.msra.mxu0 0
    %87 = vmatprep.subr.bf16.mxu0 0
    %88 = vmatpush1.bf16.msra.mxu0 0
    %89 = vmatprep.subr.bf16.mxu0 0
    %90 = vmatpush1.bf16.msra.mxu0 0
    %91 = vmatprep.subr.bf16.mxu0 0
    %92 = vmatpush1.bf16.msra.mxu0 0
    %93 = vmatprep.subr.bf16.mxu0 0
    %94 = vmatpush1.bf16.msra.mxu0 0
    %95 = vmatprep.subr.bf16.mxu0 0
    %96 = vmatpush1.bf16.msra.mxu0 0
    %97 = vmatprep.subr.bf16.mxu0 0
    %98 = vmatpush1.bf16.msra.mxu0 0
    %99 = vmatprep.subr.bf16.mxu0 0
    %100 = vmatpush1.bf16.msra.mxu0 0
    %101 = vmatprep.subr.bf16.mxu0 0
    %102 = vmatpush1.bf16.msra.mxu0 0
    %103 = vmatprep.subr.bf16.mxu0 0
    %104 = vmatpush1.bf16.msra.mxu0 0
    %105 = vmatprep.mubr.bf16.mxu0 0
    %106 = vmatmul.mubr.bf16.gmra.mrb[0].mxu0 %v71
    %v107 = vpop.f32.mrb[0].mxu0
    %v108 = vadd.f32 0.0, %v107
    %v109 = vpop.f32.mrb[0].mxu0
    %v110 = vpop.f32.mrb[0].mxu0
    %v111 = vpop.f32.mrb[0].mxu0
    %112 = vdwg.mxu0
    %v113 = vadd.f32 %v34, %v108
    %vm114 = vcmask 261120
    %115 = vst.msk [vmem:[#allocation2] sm:$0xff] %vm114, %v113
    // Predicated region
    $region34: #{tpu_custom_call.1} parent=1 // pred_check
      %p116 = pneg %p28
    $region35: #{tpu_custom_call.1} parent=1 // pred_check_branch
      %118 = sbr.rel (%p116) target = $region37
    $region36: #{tpu_custom_call.1} parent=1 // pred_region
      %v119 = vld [vmem:[#allocation2] sm:$0xff]
      %v120 = vld [vmem:[%s2] sm:$0x1]
      %v122 = vlaneseq
      %v123 = vshrl.u32 %v122, 7
      %v124 = vsub.s32 0, %v123
      %v125 = vrot.slane %v120, %v124
      %v127 = vadd.f32 %v119, %v125
      %v128 = vmax.f32 %v127, 0.0
      %v129 = vpack.c.bf16 %v128, %v128
      %v130 = vld [vmem:[%s3] sm:$0xf]
      %v131 = vld [vmem:[%s3 + $0x4] sm:$0xf]
      %v132 = vld [vmem:[%s3 + $0x8] sm:$0xf]
      %v133 = vld [vmem:[%s3 + $0xc] sm:$0xf]
      %v134 = vld [vmem:[%s4] sm:$0x1]
      %v136 = vlaneseq
      %v137 = vshrl.u32 %v136, 7
      %v138 = vsub.s32 0, %v137
      %v139 = vrot.slane %v134, %v138
      %v145 = vunpack.c.l.b16 %v130
      %v146 = vunpack.c.l.b16 %v131
      %v147 = vunpack.c.l.b16 %v132
      %v148 = vunpack.c.l.b16 %v133
      %v149 = vpack.c.b16 %v146, %v145
      %v150 = vpack.c.b16 %v148, %v147
      %v154 = vsel %vm114, %v129, 0
      %156 = vmatprep.subr.bf16.mxu0 0
      %157 = vmatpush1.bf16.msra.mxu0 %v149
      %158 = vmatprep.subr.bf16.mxu0 0
      %159 = vmatpush1.bf16.msra.mxu0 %v150
      %160 = vmatprep.subr.bf16.mxu0 0
      %161 = vmatpush1.bf16.msra.mxu0 0
      %162 = vmatprep.subr.bf16.mxu0 0
      %163 = vmatpush1.bf16.msra.mxu0 0
      %164 = vmatprep.subr.bf16.mxu0 0
      %165 = vmatpush1.bf16.msra.mxu0 0
      %166 = vmatprep.subr.bf16.mxu0 0
      %167 = vmatpush1.bf16.msra.mxu0 0
      %168 = vmatprep.subr.bf16.mxu0 0
      %169 = vmatpush1.bf16.msra.mxu0 0
      %170 = vmatprep.subr.bf16.mxu0 0
      %171 = vmatpush1.bf16.msra.mxu0 0
      %172 = vmatprep.subr.bf16.mxu0 0
      %173 = vmatpush1.bf16.msra.mxu0 0
      %174 = vmatprep.subr.bf16.mxu0 0
      %175 = vmatpush1.bf16.msra.mxu0 0
      %176 = vmatprep.subr.bf16.mxu0 0
      %177 = vmatpush1.bf16.msra.mxu0 0
      %178 = vmatprep.subr.bf16.mxu0 0
      %179 = vmatpush1.bf16.msra.mxu0 0
      %180 = vmatprep.subr.bf16.mxu0 0
      %181 = vmatpush1.bf16.msra.mxu0 0
      %182 = vmatprep.subr.bf16.mxu0 0
      %183 = vmatpush1.bf16.msra.mxu0 0
      %184 = vmatprep.subr.bf16.mxu0 0
      %185 = vmatpush1.bf16.msra.mxu0 0
      %186 = vmatprep.subr.bf16.mxu0 0
      %187 = vmatpush1.bf16.msra.mxu0 0
      %188 = vmatprep.mubr.bf16.mxu0 0
      %189 = vmatmul.mubr.bf16.gmra.mrb[0].mxu0 %v154
      %v190 = vpop.f32.mrb[0].mxu0
      %v191 = vadd.f32 %v139, %v190
      %v192 = vpop.f32.mrb[0].mxu0
      %v193 = vpop.f32.mrb[0].mxu0
      %v194 = vpop.f32.mrb[0].mxu0
      %195 = vdwg.mxu0
      %v196 = vmax.f32 %v191, 0.0
      %v197 = vpack.c.bf16 %v196, %v196
      %v198 = vld [vmem:[%s5] sm:$0xf]
      %v199 = vld [vmem:[%s5 + $0x4] sm:$0xf]
      %v200 = vld [vmem:[%s5 + $0x8] sm:$0xf]
      %v201 = vld [vmem:[%s5 + $0xc] sm:$0xf]
      %v202 = vld [vmem:[%s6] sm:$0x1]
      %v204 = vlaneseq
      %v205 = vshrl.u32 %v204, 7
      %v206 = vsub.s32 0, %v205
      %v207 = vrot.slane %v202, %v206
      %v213 = vunpack.c.l.b16 %v198
      %v214 = vunpack.c.l.b16 %v199
      %v215 = vunpack.c.l.b16 %v200
      %v216 = vunpack.c.l.b16 %v201
      %v217 = vpack.c.b16 %v214, %v213
      %v218 = vpack.c.b16 %v216, %v215
      %v222 = vsel %vm114, %v197, 0
      %224 = vmatprep.subr.bf16.mxu0 0
      %225 = vmatpush1.bf16.msra.mxu0 %v217
      %226 = vmatprep.subr.bf16.mxu0 0
      %227 = vmatpush1.bf16.msra.mxu0 %v218
      %228 = vmatprep.subr.bf16.mxu0 0
      %229 = vmatpush1.bf16.msra.mxu0 0
      %230 = vmatprep.subr.bf16.mxu0 0
      %231 = vmatpush1.bf16.msra.mxu0 0
      %232 = vmatprep.subr.bf16.mxu0 0
      %233 = vmatpush1.bf16.msra.mxu0 0
      %234 = vmatprep.subr.bf16.mxu0 0
      %235 = vmatpush1.bf16.msra.mxu0 0
      %236 = vmatprep.subr.bf16.mxu0 0
      %237 = vmatpush1.bf16.msra.mxu0 0
      %238 = vmatprep.subr.bf16.mxu0 0
      %239 = vmatpush1.bf16.msra.mxu0 0
      %240 = vmatprep.subr.bf16.mxu0 0
      %241 = vmatpush1.bf16.msra.mxu0 0
      %242 = vmatprep.subr.bf16.mxu0 0
      %243 = vmatpush1.bf16.msra.mxu0 0
      %244 = vmatprep.subr.bf16.mxu0 0
      %245 = vmatpush1.bf16.msra.mxu0 0
      %246 = vmatprep.subr.bf16.mxu0 0
      %247 = vmatpush1.bf16.msra.mxu0 0
      %248 = vmatprep.subr.bf16.mxu0 0
      %249 = vmatpush1.bf16.msra.mxu0 0
      %250 = vmatprep.subr.bf16.mxu0 0
      %251 = vmatpush1.bf16.msra.mxu0 0
      %252 = vmatprep.subr.bf16.mxu0 0
      %253 = vmatpush1.bf16.msra.mxu0 0
      %254 = vmatprep.subr.bf16.mxu0 0
      %255 = vmatpush1.bf16.msra.mxu0 0
      %256 = vmatprep.mubr.bf16.mxu0 0
      %257 = vmatmul.mubr.bf16.gmra.mrb[0].mxu0 %v222
      %v258 = vpop.f32.mrb[0].mxu0
      %v259 = vadd.f32 %v207, %v258
      %v260 = vpop.f32.mrb[0].mxu0
      %v261 = vpop.f32.mrb[0].mxu0
      %v262 = vpop.f32.mrb[0].mxu0
      %263 = vdwg.mxu0
      %264 = vst [vmem:[#allocation3] sm:$0xff] %v259
    $region37: #{tpu_custom_call.1} parent=1 // pred_fallthru
      _
    // Predicated region
    $region38: #{tpu_custom_call.1} parent=1 // pred_check
      _
    $region39: #{tpu_custom_call.1} parent=1 // pred_check_branch
      %266 = sbr.rel (0) target = $region41
    $region40: #{tpu_custom_call.1} parent=1 // pred_region
      %s268 = ssub.s32 128, 128
      %269 = vsyncadd [#allocation4], %s268
      %s271 = sshll.u32 [#allocation3], 4
      %s272 = int_to_ptr.vmem [resolvable:$true] %s271
      %274 = dma.vmem_to_hbm [thread:$0]  %s272, 128, %s7, [#allocation4]
    $region41: #{tpu_custom_call.1} parent=1 // pred_fallthru
      _
    // Predicated region
    $region42: #{tpu_custom_call.1} parent=1 // pred_check
      _
    $region43: #{tpu_custom_call.1} parent=1 // pred_check_branch
      %276 = sbr.rel (0) target = $region45
    $region44: #{tpu_custom_call.1} parent=1 // pred_region
      %277 = dma.done [#allocation4], 128
    $region45: #{tpu_custom_call.1} parent=1 // pred_fallthru
      _
    %278 = vsyncpa [#allocation4], 1

</llo_original>
